<compile_context>
chip_gen: v6e
topology: v6e:2x2x1
jax: 0.10.0
libtpu: 0.0.40
codegen_flags: <defaults>
</compile_context>

<pallas_src>
import jax
import jax.numpy as jnp
from jax.experimental import pallas as pl
from jax.experimental.pallas import tpu as pltpu

_LANE = 128
_MAX_LANE_W = 2048                   # widest lane slab we try (multiple of 128)
_TILE_BYTES = 6 * 1024 * 1024        # per VMEM buffer; x2 arrays x2 bufs = 24 MiB
_VMEM_LIMIT = 32 * 1024 * 1024       # explicit scoped-VMEM limit (raises v5e's 16 MiB
                                     # default; leaves headroom on v7x's 64 MiB VMEM)
_SINGLE_BLOCK_BYTES = 512 * 1024     # below this, a single block (pipelining can't help)
_MIN_TILED_STEPS = 4                 # enough steps to overlap DMA-in/compute/DMA-out
_SMALL_ELEMS = 1 << 20               # dispatcher: below this XLA fusion beats a kernel
_ROW_GRAN = 32                       # row-tile granularity: clean sublane packing for
                                     # f32 (8), bf16 (16) and int8 (32)


def _relu_kernel(x_ref, o_ref):
    # Pure VPU elementwise max against a scalar-splat zero (cheapest lowering).
    o_ref[...] = jnp.maximum(x_ref[...], 0)


def _cost(n_elems, itemsize):
    # Tiny-compute, bandwidth-heavy: read + write one full pass each.
    return pl.CostEstimate(flops=n_elems, transcendentals=0,
                           bytes_accessed=2 * n_elems * itemsize)


def _compiler_params():
    return pltpu.CompilerParams(
        # Independent tiles: shard the grid across v7x's two TensorCores
        # (no-op on single-TC v5e / v6e).
        dimension_semantics=("parallel",),
        vmem_limit_bytes=_VMEM_LIMIT,
    )


def _pick_row_tiling(rows, budget_rows):
    """Pick (tile_rows, grid_len): at least _MIN_TILED_STEPS steps, even step
    count where possible (balanced v7x 2-TC sharding), tile_rows a multiple of
    _ROW_GRAN (sublane packing for all dtypes)."""
    steps = pl.cdiv(rows, budget_rows)
    steps = max(steps, _MIN_TILED_STEPS)
    if steps % 2:
        steps += 1
    tile_rows = pl.cdiv(rows, steps)
    tile_rows = ((tile_rows + _ROW_GRAN - 1) // _ROW_GRAN) * _ROW_GRAN
    if tile_rows >= rows:
        # Degenerate: fall back to one full-extent block (always legal).
        return rows, 1
    return tile_rows, pl.cdiv(rows, tile_rows)


def _relu_lane_dense(x_flat, n, itemsize):
    """n is a multiple of 128: reshape into a lane-dense (rows, lane_w) slab."""
    lane_w = _LANE
    for w in range(_MAX_LANE_W, _LANE - 1, -_LANE):
        if n % w == 0:
            lane_w = w
            break
    rows = n // lane_w
    x2d = x_flat.reshape(rows, lane_w)

    if n * itemsize <= _SINGLE_BLOCK_BYTES:
        # Single block equal to the full array dims: legal regardless of the
        # (8,128) divisibility rule; pipelining can't help at this size.
        tile_rows, grid_len = rows, 1
    else:
        budget_rows = max(
            _ROW_GRAN,
            (_TILE_BYTES // (lane_w * itemsize)) // _ROW_GRAN * _ROW_GRAN,
        )
        tile_rows, grid_len = _pick_row_tiling(rows, budget_rows)

    out2d = pl.pallas_call(
        _relu_kernel,
        out_shape=jax.ShapeDtypeStruct((rows, lane_w), x_flat.dtype),
        grid=(grid_len,),
        in_specs=[pl.BlockSpec((tile_rows, lane_w), lambda i: (i, 0))],
        out_specs=pl.BlockSpec((tile_rows, lane_w), lambda i: (i, 0)),
        compiler_params=_compiler_params(),
        cost_estimate=_cost(n, itemsize),
    )(x2d)
    return out2d.reshape(-1)


def _relu_ragged(x_flat, n, itemsize):
    """n is NOT a multiple of 128: no padding/slicing (no extra HBM passes).
    View as (1, n) and block along the lane axis; Pallas masks the ragged
    edge block with partial (masked) stores."""
    x2d = x_flat.reshape(1, n)

    if n * itemsize <= _SINGLE_BLOCK_BYTES:
        tile_elems, grid_len = n, 1            # full-extent block: always legal
    else:
        # Blocks occupy a single sublane row, so VMEM cost is ~8x logical size;
        # keep the logical tile at _TILE_BYTES/8 so each buffer stays ~6 MiB.
        budget = max(_LANE,
                     ((_TILE_BYTES // 8) // itemsize) // _LANE * _LANE)
        steps = max(pl.cdiv(n, budget), _MIN_TILED_STEPS)
        if steps % 2:
            steps += 1
        tile_elems = ((pl.cdiv(n, steps) + _LANE - 1) // _LANE) * _LANE
        if tile_elems >= n:
            tile_elems, grid_len = n, 1
        else:
            grid_len = pl.cdiv(n, tile_elems)

    out2d = pl.pallas_call(
        _relu_kernel,
        out_shape=jax.ShapeDtypeStruct((1, n), x_flat.dtype),
        grid=(grid_len,),
        in_specs=[pl.BlockSpec((1, tile_elems), lambda i: (0, i))],
        out_specs=pl.BlockSpec((1, tile_elems), lambda i: (0, i)),
        compiler_params=_compiler_params(),
        cost_estimate=_cost(n, itemsize),
    )(x2d)
    return out2d.reshape(-1)


def relu_pallas(x: jax.Array) -> jax.Array:
    """Elementwise ReLU matching torch.nn.functional.relu semantics."""
    orig_shape = x.shape
    n = x.size
    if n == 0:
        return x
    itemsize = jnp.dtype(x.dtype).itemsize
    x_flat = x.reshape(-1)
    if n % _LANE == 0:
        out_flat = _relu_lane_dense(x_flat, n, itemsize)
    else:
        out_flat = _relu_ragged(x_flat, n, itemsize)
    return out_flat.reshape(orig_shape)


def relu(x: jax.Array) -> jax.Array:
    """Size-thresholded ReLU: small tensors stay in the surrounding XLA graph
    (launch + reshape boundaries dominate); large tensors use the Pallas kernel."""
    if x.size < _SMALL_ELEMS:
        return jnp.maximum(x, 0)
    return relu_pallas(x)


if __name__ == "__main__":
    # Module M has no parameters; input shape from the reference: [1, 384, 5, 5].
    key = jax.random.PRNGKey(0)
    x = jax.random.normal(key, (1, 384, 5, 5), dtype=jnp.float32)

    # 1) Exercise the Pallas kernel path explicitly on the reference shape
    #    (128-aligned -> lane-dense single-block path).
    out = jax.block_until_ready(relu_pallas(x))
    ref = jnp.maximum(x, 0.0)
    assert out.shape == x.shape and out.dtype == x.dtype
    assert jnp.array_equal(out, ref), "mismatch vs. reference ReLU"

    # 2) Dispatcher path (small tensor -> XLA fusion) must also match.
    out2 = jax.block_until_ready(relu(x))
    assert jnp.array_equal(out2, ref)

    # 3) Larger bf16 case: multi-step (>=4, even) pipelined grid path.
    xl = jax.random.normal(jax.random.PRNGKey(1), (4, 256, 32, 32), dtype=jnp.bfloat16)
    outl = jax.block_until_ready(relu_pallas(xl))
    assert jnp.array_equal(outl, jnp.maximum(xl, 0)), "mismatch on tiled bf16 case"

    # 4) Unaligned sizes: no pad/slice round-trip.
    #    a) tiny unaligned -> single full-extent (1, n) block
    xs = jax.random.normal(jax.random.PRNGKey(2), (7, 11, 13), dtype=jnp.float32)
    outs = jax.block_until_ready(relu_pallas(xs))
    assert jnp.array_equal(outs, jnp.maximum(xs, 0)), "mismatch on small ragged case"
    #    b) large unaligned -> multi-block grid with masked ragged edge block
    xr = jax.random.normal(jax.random.PRNGKey(3), (3, 5, 7, 4093), dtype=jnp.float32)
    outr = jax.block_until_ready(relu_pallas(xr))
    assert jnp.array_equal(outr, jnp.maximum(xr, 0)), "mismatch on tiled ragged case"

    print("KERNEL_OK")
</pallas_src>

<mosaic_0001>
module attributes {stable_mosaic.version = 11 : i64} {
  func.func @_relu_kernel(%arg0: i32, %arg1: memref<5x1920xf32, #tpu.memory_space<vmem>>, %arg2: memref<5x1920xf32, #tpu.memory_space<vmem>>) attributes {dimension_semantics = [#tpu.dimension_semantics<parallel>], iteration_bounds = array<i64: 1>, scalar_prefetch = 0 : i64, scratch_operands = 0 : i64, tpu.core_type = #tpu.core_type<tc>, window_params = [{transform_indices = @transform_0, window_bounds = array<i64: 5, 1920>}, {transform_indices = @transform_1, window_bounds = array<i64: 5, 1920>}]} {
    %c0 = arith.constant 0 : index
    %c0_0 = arith.constant 0 : index
    %0 = vector.load %arg1[%c0, %c0_0] : memref<5x1920xf32, #tpu.memory_space<vmem>>, vector<5x1920xf32>
    %cst = arith.constant 0.000000e+00 : f32
    %1 = vector.broadcast %cst : f32 to vector<5x1920xf32>
    %2 = arith.maximumf %0, %1 : vector<5x1920xf32>
    %c0_1 = arith.constant 0 : index
    %c0_2 = arith.constant 0 : index
    %3 = vector.load %arg2[%c0_1, %c0_2] : memref<5x1920xf32, #tpu.memory_space<vmem>>, vector<5x1920xf32>
    tpu.vector_store %arg2[%c0_1, %c0_2], %2 {strides = array<i32>} : memref<5x1920xf32, #tpu.memory_space<vmem>>, vector<5x1920xf32>,
    return
  }
  func.func @transform_0(%arg0: i32) -> (i32, i32) {
    %c0_i32 = arith.constant 0 : i32
    %c0_i32_0 = arith.constant 0 : i32
    return %arg0, %c0_i32 : i32, i32
  }
  func.func @transform_1(%arg0: i32) -> (i32, i32) {
    %c0_i32 = arith.constant 0 : i32
    %c0_i32_0 = arith.constant 0 : i32
    return %arg0, %c0_i32 : i32, i32
  }
}

</mosaic_0001>

<llo_original>
// kernel: tpu_custom_call.1
$region0: #{tpu_custom_call.1}
  #allocation0 [shape = 'u32[]', space=smem, size = 0x4, offset = 0x4, fixed_abs, tag = 'smem constant byte address 0x4 - core index']
  #allocation1 [shape = 'u32[144,128]{1,0:T(1,128)}', space=vmem, size = 0x12000, scoped, tag = 'internal scratch']
  %s0 = inlined_call_operand.hbm [shape: f32[5,1920], index: 0, kind: input, shape index: {}]
  %s1 = inlined_call_operand.hbm [shape: f32[5,1920], index: 1, kind: output, shape index: {}]
  %s2 = sld [smem:[#allocation0]]
  $region18: #{tpu_custom_call.1} parent=0
    _
  %s4 = ssub.s32 1, %s2
  %s5 = scalar_select 0, %s4, %s2
  $region1: #{tpu_custom_call.1} parent=0
    #allocation2 [shape = 'u8[61440]{0}', space=vmem, size = 0xf000, scoped, tag = 'input window, operand 0, single buffered']
    #allocation3 [shape = 's32[1]{0}', space=sflag, size = 0x4, scoped, tag = 'scoped memory for tpu_custom_call.1']
    #allocation4 [shape = 's32[1]{0}', space=sflag, size = 0x4, scoped, tag = 'scoped memory for tpu_custom_call.1']
    #allocation5 [shape = 'u8[61440]{0}', space=vmem, size = 0xf000, scoped, tag = 'output window, operand 0, single buffered']
    %6 = vsyncpa [#allocation3], 0
    %7 = vsyncpa [#allocation4], 0
    // Predicated region
    $region2: #{tpu_custom_call.1} parent=1 // pred_check
      _
    $region3: #{tpu_custom_call.1} parent=1 // pred_check_branch
      %9 = sbr.rel (0) target = $region5
    $region4: #{tpu_custom_call.1} parent=1 // pred_region
      %s11 = ssub.s32 1920, 1920
      %12 = vsyncadd [#allocation3], %s11
      %s14 = sshll.u32 [#allocation2], 4
      %s15 = int_to_ptr.vmem [resolvable:$true] %s14
      %17 = dma.hbm_to_vmem [thread:$0]  %s0, 1920, %s15, [#allocation3]
    $region5: #{tpu_custom_call.1} parent=1 // pred_fallthru
      _
    // Predicated region
    $region6: #{tpu_custom_call.1} parent=1 // pred_check
      _
    $region7: #{tpu_custom_call.1} parent=1 // pred_check_branch
      %19 = sbr.rel (0) target = $region9
    $region8: #{tpu_custom_call.1} parent=1 // pred_region
      %20 = dma.done [#allocation3], 1920
    $region9: #{tpu_custom_call.1} parent=1 // pred_fallthru
      _
    %v21 = vld [vmem:[#allocation2] sm:$0x1f]
    %v22 = vld [vmem:[#allocation2 + $0x8] sm:$0x1f]
    %v23 = vld [vmem:[#allocation2 + $0x10] sm:$0x1f]
    %v24 = vld [vmem:[#allocation2 + $0x18] sm:$0x1f]
    %v25 = vld [vmem:[#allocation2 + $0x20] sm:$0x1f]
    %v26 = vld [vmem:[#allocation2 + $0x28] sm:$0x1f]
    %v27 = vld [vmem:[#allocation2 + $0x30] sm:$0x1f]
    %v28 = vld [vmem:[#allocation2 + $0x38] sm:$0x1f]
    %v29 = vld [vmem:[#allocation2 + $0x40] sm:$0x1f]
    %v30 = vld [vmem:[#allocation2 + $0x48] sm:$0x1f]
    %v31 = vld [vmem:[#allocation2 + $0x50] sm:$0x1f]
    %v32 = vld [vmem:[#allocation2 + $0x58] sm:$0x1f]
    %v33 = vld [vmem:[#allocation2 + $0x60] sm:$0x1f]
    %v34 = vld [vmem:[#allocation2 + $0x68] sm:$0x1f]
    %v35 = vld [vmem:[#allocation2 + $0x70] sm:$0x1f]
    %v36 = vmax.f32 %v21, 0.0
    %v37 = vmax.f32 %v22, 0.0
    %v38 = vmax.f32 %v23, 0.0
    %v39 = vmax.f32 %v24, 0.0
    %v40 = vmax.f32 %v25, 0.0
    %v41 = vmax.f32 %v26, 0.0
    %v42 = vmax.f32 %v27, 0.0
    %v43 = vmax.f32 %v28, 0.0
    %v44 = vmax.f32 %v29, 0.0
    %v45 = vmax.f32 %v30, 0.0
    %v46 = vmax.f32 %v31, 0.0
    %v47 = vmax.f32 %v32, 0.0
    %v48 = vmax.f32 %v33, 0.0
    %v49 = vmax.f32 %v34, 0.0
    %v50 = vmax.f32 %v35, 0.0
    %51 = vst [vmem:[#allocation5] sm:$0x1f] %v36
    %52 = vst [vmem:[#allocation5 + $0x8] sm:$0x1f] %v37
    %53 = vst [vmem:[#allocation5 + $0x10] sm:$0x1f] %v38
    %54 = vst [vmem:[#allocation5 + $0x18] sm:$0x1f] %v39
    %55 = vst [vmem:[#allocation5 + $0x20] sm:$0x1f] %v40
    %56 = vst [vmem:[#allocation5 + $0x28] sm:$0x1f] %v41
    %57 = vst [vmem:[#allocation5 + $0x30] sm:$0x1f] %v42
    %58 = vst [vmem:[#allocation5 + $0x38] sm:$0x1f] %v43
    %59 = vst [vmem:[#allocation5 + $0x40] sm:$0x1f] %v44
    %60 = vst [vmem:[#allocation5 + $0x48] sm:$0x1f] %v45
    %61 = vst [vmem:[#allocation5 + $0x50] sm:$0x1f] %v46
    %62 = vst [vmem:[#allocation5 + $0x58] sm:$0x1f] %v47
    %63 = vst [vmem:[#allocation5 + $0x60] sm:$0x1f] %v48
    %64 = vst [vmem:[#allocation5 + $0x68] sm:$0x1f] %v49
    %65 = vst [vmem:[#allocation5 + $0x70] sm:$0x1f] %v50
    // Predicated region
    $region10: #{tpu_custom_call.1} parent=1 // pred_check
      _
    $region11: #{tpu_custom_call.1} parent=1 // pred_check_branch
      %67 = sbr.rel (0) target = $region13
    $region12: #{tpu_custom_call.1} parent=1 // pred_region
      %s69 = ssub.s32 1920, 1920
      %70 = vsyncadd [#allocation4], %s69
      %s72 = sshll.u32 [#allocation5], 4
      %s73 = int_to_ptr.vmem [resolvable:$true] %s72
      %75 = dma.vmem_to_hbm [thread:$0]  %s73, 1920, %s1, [#allocation4]
    $region13: #{tpu_custom_call.1} parent=1 // pred_fallthru
      _
    // Predicated region
    $region14: #{tpu_custom_call.1} parent=1 // pred_check
      _
    $region15: #{tpu_custom_call.1} parent=1 // pred_check_branch
      %77 = sbr.rel (0) target = $region17
    $region16: #{tpu_custom_call.1} parent=1 // pred_region
      %78 = dma.done [#allocation4], 1920
    $region17: #{tpu_custom_call.1} parent=1 // pred_fallthru
      _
    %79 = vsyncpa [#allocation3], 1
    %80 = vsyncpa [#allocation4], 1

</llo_original>
